<compile_context>
chip_gen: v7x
topology: tpu7x:2x2x1
jax: 0.10.0
libtpu: 0.0.40
codegen_flags: <defaults>
</compile_context>

<pallas_src>
import functools

import jax
import jax.numpy as jnp
from jax.experimental import pallas as pl
from jax.experimental.pallas import tpu as pltpu


def _round_up(x, m):
    return ((x + m - 1) // m) * m


def _leaky(y, slope):
    # Specialize at trace time: slope is a static Python float.
    if slope == 0.0:
        return jnp.maximum(y, 0.0)
    return jnp.where(y >= 0, y, slope * y)


def _ffn_kernel(x_ref, w_ref, b_ref, o_ref, *, n_dense, slope, out_nonlin,
                compute_dtype):
    """One row-tile of the positionwise FFN.

    x_ref: (tm, Dp)         input rows
    w_ref: (N, Dp, Dp)      stacked weights, pre-transposed to (in, out) layout
    b_ref: (N, 1, Dp)       stacked biases (f32)
    o_ref: (tm, Dp)         output rows
    """
    h = x_ref[...].astype(compute_dtype)
    y = h
    for i in range(n_dense):
        # (tm, D_in) @ (D_in, D_out) straight onto the MXU; f32 accumulation.
        y = jnp.dot(h, w_ref[i], preferred_element_type=jnp.float32)
        y = y + b_ref[i]                       # bias + activation in f32
        if i < n_dense - 1:
            y = _leaky(y, slope)               # F.leaky_relu (+ dropout == identity)
            h = y.astype(compute_dtype)        # keep intermediates in compute dtype
        else:
            if out_nonlin == "relu":
                y = _leaky(y, slope)           # PyTorch: leaky_relu with same slope
            elif out_nonlin == "tanh":
                y = jnp.tanh(y)
            elif out_nonlin == "none":
                pass
    o_ref[...] = y.astype(o_ref.dtype)


def positionwise_feed_forward(x, weights, biases, *,
                              leaky_relu_slope=0.0,
                              dense_output_nonlinearity="relu",
                              row_tile=512,
                              compute_dtype=None):
    """x: (B, S, D).  weights: (N, D, D) in PyTorch (out, in) layout.
    biases: (N, D).  Returns (B, S, D) (eval-mode forward, dropout = identity)."""
    if dense_output_nonlinearity not in ("relu", "tanh", "none"):
        raise ValueError(dense_output_nonlinearity)
    n_dense = int(weights.shape[0])
    if n_dense == 0:
        return x

    B, S, D = x.shape
    M = B * S
    x_dtype = x.dtype
    compute_dtype = jnp.dtype(x_dtype if compute_dtype is None else compute_dtype)

    # Lane padding only when it actually helps: D <= 128 (or already a lane
    # multiple) uses the full-extent block and avoids inflating HBM traffic.
    Dp = _round_up(D, 128) if (D > 128 and D % 128 != 0) else D

    # Row tile: sublane granularity per dtype packing of the x/out tiles,
    # shrunk so the "parallel" grid has >= 2 steps (both v7x TCs get work),
    # aligned to 256 when large for full MXU passes (also a 128-multiple, v5e).
    sub = {4: 8, 2: 16, 1: 32}.get(jnp.dtype(x_dtype).itemsize, 8)
    tm = min(int(row_tile), _round_up(pl.cdiv(M, 2), sub))
    tm = max(sub, _round_up(tm, sub))
    if tm >= 256:
        tm = (tm // 256) * 256
    grid_m = pl.cdiv(M, tm)          # ragged final block: Pallas masks the stores

    # One-time wrapper-side weight transpose to (N, D_in, D_out).
    w = jnp.swapaxes(weights, 1, 2)
    x2 = x.reshape(M, D)
    b = biases
    if Dp != D:
        # Zero padding keeps padded lanes exactly 0 through leaky/relu/tanh/none
        # (all have f(0) == 0) and through zero weight columns.
        w = jnp.pad(w, ((0, 0), (0, Dp - D), (0, Dp - D)))
        b = jnp.pad(b, ((0, 0), (0, Dp - D)))
        x2 = jnp.pad(x2, ((0, 0), (0, Dp - D)))
    w = w.astype(compute_dtype)
    b2 = b.reshape(n_dense, 1, Dp).astype(jnp.float32)

    # VMEM budget: leave ~12.5% headroom for Mosaic scratch / pipeline buffers.
    try:
        vmem_cap = int(pltpu.get_tpu_info().vmem_capacity_bytes)
    except Exception:
        vmem_cap = 64 * 1024 * 1024
    vmem_limit = (vmem_cap * 7) // 8

    itemsize = jnp.dtype(x_dtype).itemsize
    cost = pl.CostEstimate(
        flops=int(2 * n_dense * M * Dp * Dp),
        transcendentals=int(M * Dp) if dense_output_nonlinearity == "tanh" else 0,
        bytes_accessed=int(x2.size * itemsize + M * Dp * itemsize
                           + w.size * w.dtype.itemsize + b2.size * 4),
    )

    kernel = functools.partial(
        _ffn_kernel,
        n_dense=n_dense,
        slope=float(leaky_relu_slope),
        out_nonlin=dense_output_nonlinearity,
        compute_dtype=compute_dtype,
    )

    def build(single_buffer_consts):
        # Constant-index weight/bias blocks: single buffer halves resident VMEM.
        const_kw = {"pipeline_mode": pl.Buffered(1)} if single_buffer_consts else {}
        return pl.pallas_call(
            kernel,
            out_shape=jax.ShapeDtypeStruct((M, Dp), x_dtype),
            grid_spec=pltpu.PrefetchScalarGridSpec(
                num_scalar_prefetch=0,
                grid=(grid_m,),
                in_specs=[
                    pl.BlockSpec((tm, Dp), lambda i: (i, 0)),                        # x rows
                    pl.BlockSpec((n_dense, Dp, Dp), lambda i: (0, 0, 0), **const_kw),  # weights
                    pl.BlockSpec((n_dense, 1, Dp), lambda i: (0, 0, 0), **const_kw),   # biases
                ],
                out_specs=pl.BlockSpec((tm, Dp), lambda i: (i, 0)),
            ),
            compiler_params=pltpu.CompilerParams(
                dimension_semantics=("parallel",),
                vmem_limit_bytes=vmem_limit,
            ),
            cost_estimate=cost,
        )

    try:
        out2 = build(True)(x2, w, b2)
    except Exception:
        # Fallback for builds where pl.Buffered(1) is rejected by the grid
        # pipeline: default (double-buffered) constant blocks.
        out2 = build(False)(x2, w, b2)

    if Dp != D:
        out2 = out2[:, :D]
    return out2.reshape(B, S, D)


def _reference(x, weights, biases, slope, out_nonlin):
    """Plain-JAX reference mirroring the PyTorch forward (eval mode)."""
    n = weights.shape[0]
    h = x
    for i in range(n - 1):
        y = jnp.einsum("bsd,od->bso", h, weights[i]) + biases[i]
        h = jnp.where(y >= 0, y, slope * y)
    y = jnp.einsum("bsd,od->bso", h, weights[n - 1]) + biases[n - 1]
    if out_nonlin == "relu":
        y = jnp.where(y >= 0, y, slope * y)
    elif out_nonlin == "tanh":
        y = jnp.tanh(y)
    return y


if __name__ == "__main__":
    # Module hyperparameters (small, consistent with the forward pass).
    d_model = 32
    N_dense = 2
    batch, seq = 2, 8

    key = jax.random.PRNGKey(0)
    kx, kw, kb = jax.random.split(key, 3)

    x = jax.random.normal(kx, (batch, seq, d_model), dtype=jnp.float32)

    # Deterministic parameter init, matching nn.Linear's U(-1/sqrt(d), 1/sqrt(d)).
    bound = 1.0 / (d_model ** 0.5)
    weights = jax.random.uniform(kw, (N_dense, d_model, d_model),
                                 minval=-bound, maxval=bound, dtype=jnp.float32)
    biases = jax.random.uniform(kb, (N_dense, d_model),
                                minval=-bound, maxval=bound, dtype=jnp.float32)

    # f32 path: all output nonlinearities, zero and nonzero leaky slopes.
    for slope in (0.0, 0.1):
        for out_nonlin in ("relu", "tanh", "none"):
            out = positionwise_feed_forward(
                x, weights, biases,
                leaky_relu_slope=slope,
                dense_output_nonlinearity=out_nonlin,
            )
            out = jax.block_until_ready(out)
            ref = _reference(x, weights, biases, slope, out_nonlin)
            assert out.shape == (batch, seq, d_model)
            assert jnp.allclose(out, ref, atol=1e-4, rtol=1e-4), \
                f"mismatch (slope={slope}, {out_nonlin})"

    # bf16 MXU path (f32 accumulation): looser tolerance vs the f32 reference.
    out_bf16 = positionwise_feed_forward(
        x, weights, biases,
        leaky_relu_slope=0.0,
        dense_output_nonlinearity="relu",
        compute_dtype=jnp.bfloat16,
    )
    out_bf16 = jax.block_until_ready(out_bf16)
    ref = _reference(x, weights, biases, 0.0, "relu")
    assert jnp.allclose(out_bf16, ref, atol=1e-1, rtol=1e-1), "mismatch (bf16 path)"

    print("KERNEL_OK")
</pallas_src>

<mosaic_0001>
module attributes {stable_mosaic.version = 11 : i64} {
  func.func @_ffn_kernel(%arg0: i32, %arg1: memref<8x32xf32, #tpu.memory_space<vmem>>, %arg2: memref<2x32x32xf32, #tpu.memory_space<vmem>>, %arg3: memref<2x1x32xf32, #tpu.memory_space<vmem>>, %arg4: memref<8x32xf32, #tpu.memory_space<vmem>>) attributes {dimension_semantics = [#tpu.dimension_semantics<parallel>], iteration_bounds = array<i64: 2>, scalar_prefetch = 0 : i64, scratch_operands = 0 : i64, tpu.core_type = #tpu.core_type<tc>, window_params = [{transform_indices = @transform_0, window_bounds = array<i64: 8, 32>}, {pipeline_mode = #tpu.pipeline_mode<synchronous>, transform_indices = @transform_1, window_bounds = array<i64: 2, 32, 32>}, {pipeline_mode = #tpu.pipeline_mode<synchronous>, transform_indices = @transform_2, window_bounds = array<i64: 2, 1, 32>}, {transform_indices = @transform_3, window_bounds = array<i64: 8, 32>}]} {
    %c0 = arith.constant 0 : index
    %c0_0 = arith.constant 0 : index
    %0 = vector.load %arg1[%c0, %c0_0] : memref<8x32xf32, #tpu.memory_space<vmem>>, vector<8x32xf32>
    %c0_1 = arith.constant 0 : index
    %c0_2 = arith.constant 0 : index
    %c0_3 = arith.constant 0 : index
    %1 = vector.load %arg2[%c0_1, %c0_2, %c0_3] : memref<2x32x32xf32, #tpu.memory_space<vmem>>, vector<1x32x32xf32>
    %2 = vector.shape_cast %1 : vector<1x32x32xf32> to vector<32x32xf32>
    %cst = arith.constant dense<0.000000e+00> : vector<8x32xf32>
    %3 = tpu.matmul %0, %2, %cst {dimension_numbers = #tpu.dot_dimension_numbers<[1], [0], [0], [1], [0, 0, 1, 1], [], []>} : vector<8x32xf32>, vector<32x32xf32>, vector<8x32xf32> -> vector<8x32xf32>
    %c0_4 = arith.constant 0 : index
    %c0_5 = arith.constant 0 : index
    %c0_6 = arith.constant 0 : index
    %4 = vector.load %arg3[%c0_4, %c0_5, %c0_6] : memref<2x1x32xf32, #tpu.memory_space<vmem>>, vector<1x1x32xf32>
    %5 = vector.shape_cast %4 : vector<1x1x32xf32> to vector<1x32xf32>
    %6 = vector.broadcast %5 : vector<1x32xf32> to vector<8x32xf32>
    %7 = arith.addf %3, %6 : vector<8x32xf32>
    %cst_7 = arith.constant 0.000000e+00 : f32
    %8 = vector.broadcast %cst_7 : f32 to vector<8x32xf32>
    %9 = arith.maximumf %7, %8 : vector<8x32xf32>
    %c1 = arith.constant 1 : index
    %c0_8 = arith.constant 0 : index
    %c0_9 = arith.constant 0 : index
    %10 = vector.load %arg2[%c1, %c0_8, %c0_9] : memref<2x32x32xf32, #tpu.memory_space<vmem>>, vector<1x32x32xf32>
    %11 = vector.shape_cast %10 : vector<1x32x32xf32> to vector<32x32xf32>
    %cst_10 = arith.constant dense<0.000000e+00> : vector<8x32xf32>
    %12 = tpu.matmul %9, %11, %cst_10 {dimension_numbers = #tpu.dot_dimension_numbers<[1], [0], [0], [1], [0, 0, 1, 1], [], []>} : vector<8x32xf32>, vector<32x32xf32>, vector<8x32xf32> -> vector<8x32xf32>
    %c1_11 = arith.constant 1 : index
    %c0_12 = arith.constant 0 : index
    %c0_13 = arith.constant 0 : index
    %13 = vector.load %arg3[%c1_11, %c0_12, %c0_13] : memref<2x1x32xf32, #tpu.memory_space<vmem>>, vector<1x1x32xf32>
    %14 = vector.shape_cast %13 : vector<1x1x32xf32> to vector<1x32xf32>
    %15 = vector.broadcast %14 : vector<1x32xf32> to vector<8x32xf32>
    %16 = arith.addf %12, %15 : vector<8x32xf32>
    %cst_14 = arith.constant 0.000000e+00 : f32
    %17 = vector.broadcast %cst_14 : f32 to vector<8x32xf32>
    %18 = arith.maximumf %16, %17 : vector<8x32xf32>
    %c0_15 = arith.constant 0 : index
    %c0_16 = arith.constant 0 : index
    %19 = vector.load %arg4[%c0_15, %c0_16] : memref<8x32xf32, #tpu.memory_space<vmem>>, vector<8x32xf32>
    tpu.vector_store %arg4[%c0_15, %c0_16], %18 {strides = array<i32>} : memref<8x32xf32, #tpu.memory_space<vmem>>, vector<8x32xf32>,
    return
  }
  func.func @transform_0(%arg0: i32) -> (i32, i32) {
    %c0_i32 = arith.constant 0 : i32
    %c0_i32_0 = arith.constant 0 : i32
    return %arg0, %c0_i32 : i32, i32
  }
  func.func @transform_1(%arg0: i32) -> (i32, i32, i32) {
    %c0_i32 = arith.constant 0 : i32
    %c0_i32_0 = arith.constant 0 : i32
    %c0_i32_1 = arith.constant 0 : i32
    %c0_i32_2 = arith.constant 0 : i32
    return %c0_i32, %c0_i32_0, %c0_i32_1 : i32, i32, i32
  }
  func.func @transform_2(%arg0: i32) -> (i32, i32, i32) {
    %c0_i32 = arith.constant 0 : i32
    %c0_i32_0 = arith.constant 0 : i32
    %c0_i32_1 = arith.constant 0 : i32
    %c0_i32_2 = arith.constant 0 : i32
    return %c0_i32, %c0_i32_0, %c0_i32_1 : i32, i32, i32
  }
  func.func @transform_3(%arg0: i32) -> (i32, i32) {
    %c0_i32 = arith.constant 0 : i32
    %c0_i32_0 = arith.constant 0 : i32
    return %arg0, %c0_i32 : i32, i32
  }
}

module attributes {stable_mosaic.version = 11 : i64} {
  func.func @_ffn_kernel(%arg0: i32, %arg1: memref<8x32xf32, #tpu.memory_space<vmem>>, %arg2: memref<2x32x32xf32, #tpu.memory_space<vmem>>, %arg3: memref<2x1x32xf32, #tpu.memory_space<vmem>>, %arg4: memref<8x32xf32, #tpu.memory_space<vmem>>) attributes {dimension_semantics = [#tpu.dimension_semantics<parallel>], iteration_bounds = array<i64: 2>, scalar_prefetch = 0 : i64, scratch_operands = 0 : i64, tpu.core_type = #tpu.core_type<tc>, window_params = [{transform_indices = @transform_0, window_bounds = array<i64: 8, 32>}, {pipeline_mode = #tpu.pipeline_mode<synchronous>, transform_indices = @transform_1, window_bounds = array<i64: 2, 32, 32>}, {pipeline_mode = #tpu.pipeline_mode<synchronous>, transform_indices = @transform_2, window_bounds = array<i64: 2, 1, 32>}, {transform_indices = @transform_3, window_bounds = array<i64: 8, 32>}]} {
    %c0 = arith.constant 0 : index
    %c0_0 = arith.constant 0 : index
    %0 = vector.load %arg1[%c0, %c0_0] : memref<8x32xf32, #tpu.memory_space<vmem>>, vector<8x32xf32>
    %c0_1 = arith.constant 0 : index
    %c0_2 = arith.constant 0 : index
    %c0_3 = arith.constant 0 : index
    %1 = vector.load %arg2[%c0_1, %c0_2, %c0_3] : memref<2x32x32xf32, #tpu.memory_space<vmem>>, vector<1x32x32xf32>
    %2 = vector.shape_cast %1 : vector<1x32x32xf32> to vector<32x32xf32>
    %cst = arith.constant dense<0.000000e+00> : vector<8x32xf32>
    %3 = tpu.matmul %0, %2, %cst {dimension_numbers = #tpu.dot_dimension_numbers<[1], [0], [0], [1], [0, 0, 1, 1], [], []>} : vector<8x32xf32>, vector<32x32xf32>, vector<8x32xf32> -> vector<8x32xf32>
    %c0_4 = arith.constant 0 : index
    %c0_5 = arith.constant 0 : index
    %c0_6 = arith.constant 0 : index
    %4 = vector.load %arg3[%c0_4, %c0_5, %c0_6] : memref<2x1x32xf32, #tpu.memory_space<vmem>>, vector<1x1x32xf32>
    %5 = vector.shape_cast %4 : vector<1x1x32xf32> to vector<1x32xf32>
    %6 = vector.broadcast %5 : vector<1x32xf32> to vector<8x32xf32>
    %7 = arith.addf %3, %6 : vector<8x32xf32>
    %cst_7 = arith.constant 0.000000e+00 : f32
    %8 = vector.broadcast %cst_7 : f32 to vector<8x32xf32>
    %9 = arith.maximumf %7, %8 : vector<8x32xf32>
    %c1 = arith.constant 1 : index
    %c0_8 = arith.constant 0 : index
    %c0_9 = arith.constant 0 : index
    %10 = vector.load %arg2[%c1, %c0_8, %c0_9] : memref<2x32x32xf32, #tpu.memory_space<vmem>>, vector<1x32x32xf32>
    %11 = vector.shape_cast %10 : vector<1x32x32xf32> to vector<32x32xf32>
    %cst_10 = arith.constant dense<0.000000e+00> : vector<8x32xf32>
    %12 = tpu.matmul %9, %11, %cst_10 {dimension_numbers = #tpu.dot_dimension_numbers<[1], [0], [0], [1], [0, 0, 1, 1], [], []>} : vector<8x32xf32>, vector<32x32xf32>, vector<8x32xf32> -> vector<8x32xf32>
    %c1_11 = arith.constant 1 : index
    %c0_12 = arith.constant 0 : index
    %c0_13 = arith.constant 0 : index
    %13 = vector.load %arg3[%c1_11, %c0_12, %c0_13] : memref<2x1x32xf32, #tpu.memory_space<vmem>>, vector<1x1x32xf32>
    %14 = vector.shape_cast %13 : vector<1x1x32xf32> to vector<1x32xf32>
    %15 = vector.broadcast %14 : vector<1x32xf32> to vector<8x32xf32>
    %16 = arith.addf %12, %15 : vector<8x32xf32>
    %cst_14 = arith.constant 0.000000e+00 : f32
    %17 = vector.broadcast %cst_14 : f32 to vector<8x32xf32>
    %18 = arith.maximumf %16, %17 : vector<8x32xf32>
    %c0_15 = arith.constant 0 : index
    %c0_16 = arith.constant 0 : index
    %19 = vector.load %arg4[%c0_15, %c0_16] : memref<8x32xf32, #tpu.memory_space<vmem>>, vector<8x32xf32>
    tpu.vector_store %arg4[%c0_15, %c0_16], %18 {strides = array<i32>} : memref<8x32xf32, #tpu.memory_space<vmem>>, vector<8x32xf32>,
    return
  }
  func.func @transform_0(%arg0: i32) -> (i32, i32) {
    %c0_i32 = arith.constant 0 : i32
    %c0_i32_0 = arith.constant 0 : i32
    return %arg0, %c0_i32 : i32, i32
  }
  func.func @transform_1(%arg0: i32) -> (i32, i32, i32) {
    %c0_i32 = arith.constant 0 : i32
    %c0_i32_0 = arith.constant 0 : i32
    %c0_i32_1 = arith.constant 0 : i32
    %c0_i32_2 = arith.constant 0 : i32
    return %c0_i32, %c0_i32_0, %c0_i32_1 : i32, i32, i32
  }
  func.func @transform_2(%arg0: i32) -> (i32, i32, i32) {
    %c0_i32 = arith.constant 0 : i32
    %c0_i32_0 = arith.constant 0 : i32
    %c0_i32_1 = arith.constant 0 : i32
    %c0_i32_2 = arith.constant 0 : i32
    return %c0_i32, %c0_i32_0, %c0_i32_1 : i32, i32, i32
  }
  func.func @transform_3(%arg0: i32) -> (i32, i32) {
    %c0_i32 = arith.constant 0 : i32
    %c0_i32_0 = arith.constant 0 : i32
    return %arg0, %c0_i32 : i32, i32
  }
}

</mosaic_0001>

<llo_original>
// kernel: tpu_custom_call.1
$region0: #{tpu_custom_call.1}
  #allocation0 [shape = 'u32[]', space=smem, size = 0x4, offset = 0x4, fixed_abs, tag = 'smem constant byte address 0x4 - core index']
  #allocation1 [shape = 'u32[144,128]{1,0:T(1,128)}', space=vmem, size = 0x12000, scoped, tag = 'internal scratch']
  %s0 = inlined_call_operand.hbm [shape: f32[16,32], index: 0, kind: input, shape index: {}]
  %s1 = inlined_call_operand.hbm [shape: f32[2,32,32], index: 1, kind: input, shape index: {}]
  %s2 = inlined_call_operand.vmem [shape: f32[2,1,32], index: 2, kind: input, shape index: {}]
  %s3 = inlined_call_operand.hbm [shape: f32[16,32], index: 3, kind: output, shape index: {}]
  %s4 = sld [smem:[#allocation0]]
  $region53: #{tpu_custom_call.1} parent=0
    _
  %s6 = ssub.s32 1, %s4
  %s7 = scalar_select 0, %s6, %s4
  $region1: #{tpu_custom_call.1} parent=0
    #allocation2 [shape = 'u8[8192]{0}', space=vmem, size = 0x2000, scoped, tag = 'input window, operand 0']
    #allocation3 [shape = 's32[2]{0}', space=sflag, size = 0x8, scoped, tag = 'scoped memory for tpu_custom_call.1']
    #allocation4 [shape = 's32[2]{0}', space=sflag, size = 0x8, scoped, tag = 'scoped memory for tpu_custom_call.1']
    #allocation5 [shape = 'u8[32768]{0}', space=vmem, size = 0x8000, scoped, tag = 'input window, operand 1, single buffered']
    #allocation6 [shape = 's32[1]{0}', space=sflag, size = 0x4, scoped, tag = 'scoped memory for tpu_custom_call.1']
    #allocation7 [shape = 'u8[8192]{0}', space=vmem, size = 0x2000, scoped, tag = 'output window, operand 0']
    %8 = vsyncpa [#allocation3], 0
    %s9 = scalar_lea.sflag [#allocation3], 1
    %10 = vsyncpa %s9, 0
    %11 = vsyncpa [#allocation6], 0
    %12 = vsyncpa [#allocation4], 0
    %s13 = scalar_lea.sflag [#allocation4], 1
    %14 = vsyncpa %s13, 0
    loop: start=0, step=1, limit=4
    $region2: #{tpu_custom_call.1} parent=1 // loop_pre_header
      _
    $region3: #{tpu_custom_call.1} parent=1 // loop_header
      %s16 = sphi 0, %s20
      %p17 = scmp.ge.s32.totalorder %s16, 4
      %s26 = sphi 0, %s28
      %s29 = sphi 0, %s26
      %s30 = sphi 0, %s29
      %s46 = sphi 0, %s30
      %s50 = sphi 0, %s50
      %s52 = sphi 0, %s50
      %s53 = sphi 0, %s52
      %s67 = sphi 0, %s53
      %s71 = sphi 0, %s71
      %s73 = sphi 0, %s71
      %s74 = sphi 0, %s73
      %s88 = sphi 0, %s74
      %s94 = sphi 0, %s96
      %s97 = sphi 0, %s94
      %s98 = sphi 0, %s97
      %s114 = sphi 0, %s98
    $region4: #{tpu_custom_call.1} parent=1 // loop_header_branch
      %19 = sbr.rel (%p17) target = $region8
    $region5: #{tpu_custom_call.1} parent=1 // loop_body
      %s21 = ssub.s32 %s16, 1
      %s22 = ssub.s32 %s16, 2
      %s23 = sadd.s32 %s16, 1
      %s24 = ssub.s32 %s16, %s23
      %p25 = scmp.eq.s32.totalorder %s24, 0
      %s27 = sadd.s32 %s26, 1
      %s28 = scalar_select %p25, %s26, %s27
      %p31 = pneg %p25
      %p32 = scmp.eq.s32.totalorder %s16, 1
      %p33 = por %p31, %p32
      %p34 = scmp.ne.s32.totalorder %s26, %s29
      %p35 = scmp.eq.s32.totalorder %s16, 0
      %p36 = por %p34, %p35
      %p37 = scmp.ne.s32.totalorder %s26, %s29
      %p38 = scmp.eq.s32.totalorder %s21, 1
      %p39 = por %p37, %p38
      %p40 = scmp.ne.s32.totalorder %s29, %s30
      %p41 = scmp.eq.s32.totalorder %s21, 0
      %p42 = por %p40, %p41
      %p43 = scmp.ne.s32.totalorder %s29, %s30
      %p44 = scmp.eq.s32.totalorder %s22, 1
      %p45 = por %p43, %p44
      %p47 = scmp.ne.s32.totalorder %s30, %s46
      %p48 = scmp.eq.s32.totalorder %s22, 0
      %p49 = por %p47, %p48
      %s51 = sadd.s32 %s50, 1
      %p54 = scmp.eq.s32.totalorder %s16, 1
      %p55 = scmp.ne.s32.totalorder %s50, %s52
      %p56 = scmp.eq.s32.totalorder %s16, 0
      %p57 = por %p55, %p56
      %p58 = scmp.ne.s32.totalorder %s50, %s52
      %p59 = scmp.eq.s32.totalorder %s21, 1
      %p60 = por %p58, %p59
      %p61 = scmp.ne.s32.totalorder %s52, %s53
      %p62 = scmp.eq.s32.totalorder %s21, 0
      %p63 = por %p61, %p62
      %p64 = scmp.ne.s32.totalorder %s52, %s53
      %p65 = scmp.eq.s32.totalorder %s22, 1
      %p66 = por %p64, %p65
      %p68 = scmp.ne.s32.totalorder %s53, %s67
      %p69 = scmp.eq.s32.totalorder %s22, 0
      %p70 = por %p68, %p69
      %s72 = sadd.s32 %s71, 1
      %p75 = scmp.eq.s32.totalorder %s16, 1
      %p76 = scmp.ne.s32.totalorder %s71, %s73
      %p77 = scmp.eq.s32.totalorder %s16, 0
      %p78 = por %p76, %p77
      %p79 = scmp.ne.s32.totalorder %s71, %s73
      %p80 = scmp.eq.s32.totalorder %s21, 1
      %p81 = por %p79, %p80
      %p82 = scmp.ne.s32.totalorder %s73, %s74
      %p83 = scmp.eq.s32.totalorder %s21, 0
      %p84 = por %p82, %p83
      %p85 = scmp.ne.s32.totalorder %s73, %s74
      %p86 = scmp.eq.s32.totalorder %s22, 1
      %p87 = por %p85, %p86
      %p89 = scmp.ne.s32.totalorder %s74, %s88
      %p90 = scmp.eq.s32.totalorder %s22, 0
      %p91 = por %p89, %p90
      %s92 = ssub.s32 %s16, %s23
      %p93 = scmp.eq.s32.totalorder %s92, 0
      %s95 = sadd.s32 %s94, 1
      %s96 = scalar_select %p93, %s94, %s95
      %p99 = pneg %p93
      %p100 = scmp.eq.s32.totalorder %s16, 1
      %p101 = por %p99, %p100
      %p102 = scmp.ne.s32.totalorder %s94, %s97
      %p103 = scmp.eq.s32.totalorder %s16, 0
      %p104 = por %p102, %p103
      %p105 = scmp.ne.s32.totalorder %s94, %s97
      %p106 = scmp.eq.s32.totalorder %s21, 1
      %p107 = por %p105, %p106
      %p108 = scmp.ne.s32.totalorder %s97, %s98
      %p109 = scmp.eq.s32.totalorder %s21, 0
      %p110 = por %p108, %p109
      %p111 = scmp.ne.s32.totalorder %s97, %s98
      %p112 = scmp.eq.s32.totalorder %s22, 1
      %p113 = por %p111, %p112
      %p115 = scmp.ne.s32.totalorder %s98, %s114
      %p116 = scmp.eq.s32.totalorder %s22, 0
      %p117 = por %p115, %p116
      %p118 = scmp.le.s32.totalorder 1, %s16
      %p119 = scmp.lt.s32.totalorder %s16, 3
      %p120 = pnand %p118, %p119
      %p121 = pneg %p120
      // Predicated region
      $region9: #{tpu_custom_call.1} parent=5 // pred_check
        _
      $region10: #{tpu_custom_call.1} parent=5 // pred_check_branch
        %123 = sbr.rel (%p120) target = $region12
      $region11: #{tpu_custom_call.1} parent=5 // pred_region
        %s124 = ssub.s32 %s16, 1
        // Predicated region
        $region13: #{tpu_custom_call.1} parent=11 // pred_check
          %p125 = pneg %p63
        $region14: #{tpu_custom_call.1} parent=11 // pred_check_branch
          %127 = sbr.rel (%p125) target = $region16
        $region15: #{tpu_custom_call.1} parent=11 // pred_region
          %s129 = ssub.s32 1024, 1024
          %130 = vsyncadd [#allocation6], %s129
          %s131 = sshll.u32 [#allocation5], 4
          %s132 = int_to_ptr.vmem [resolvable:$true] %s131
          %137 = dma.hbm_to_vmem [thread:$0]  %s1, 1024, %s132, [#allocation6], 128, 128, 8
        $region16: #{tpu_custom_call.1} parent=11 // pred_fallthru
          _
        // Predicated region
        $region17: #{tpu_custom_call.1} parent=11 // pred_check
          %p138 = pneg %p84
        $region18: #{tpu_custom_call.1} parent=11 // pred_check_branch
          %140 = sbr.rel (%p138) target = $region20
        $region19: #{tpu_custom_call.1} parent=11 // pred_region
          _
        $region20: #{tpu_custom_call.1} parent=11 // pred_fallthru
          _
      $region12: #{tpu_custom_call.1} parent=5 // pred_fallthru
        _
      %p141 = scmp.lt.s32.totalorder %s16, 2
      // Predicated region
      $region21: #{tpu_custom_call.1} parent=5 // pred_check
        %p142 = pneg %p141
      $region22: #{tpu_custom_call.1} parent=5 // pred_check_branch
        %144 = sbr.rel (%p142) target = $region24
      $region23: #{tpu_custom_call.1} parent=5 // pred_region
        // Predicated region
        $region25: #{tpu_custom_call.1} parent=23 // pred_check
          %p145 = pneg %p36
        $region26: #{tpu_custom_call.1} parent=23 // pred_check_branch
          %147 = sbr.rel (%p145) target = $region28
        $region27: #{tpu_custom_call.1} parent=23 // pred_region
          %s148 = sand.u32 %s26, 1
          %s149 = scalar_lea.sflag [#allocation3], %s148
          %s150 = sand.u32 %s26, 1
          %s151 = smul.addr %s150, 8
          %s152 = scalar_lea.vmem [#allocation2], %s151
          %s154 = ssub.s32 128, 128
          %155 = vsyncadd %s149, %s154
          %s156 = smul.addr %s16, 128
          %s157 = scalar_lea.hbm %s0, %s156
          %s159 = sshll.u32 %s152, 4
          %s160 = int_to_ptr.vmem [resolvable:$true] %s159
          %162 = dma.hbm_to_vmem [thread:$0]  %s157, 128, %s160, %s149
        $region28: #{tpu_custom_call.1} parent=23 // pred_fallthru
          _
      $region24: #{tpu_custom_call.1} parent=5 // pred_fallthru
        _
      %p163 = scmp.le.s32.totalorder 1, %s16
      %p164 = scmp.lt.s32.totalorder %s16, 3
      %p165 = pnand %p163, %p164
      %p166 = pneg %p165
      // Predicated region
      $region29: #{tpu_custom_call.1} parent=5 // pred_check
        _
      $region30: #{tpu_custom_call.1} parent=5 // pred_check_branch
        %168 = sbr.rel (%p165) target = $region32
      $region31: #{tpu_custom_call.1} parent=5 // pred_region
        %s169 = ssub.s32 %s16, 1
        %s170 = sand.u32 %s29, 1
        %s171 = scalar_lea.sflag [#allocation3], %s170
        %s172 = sand.u32 %s29, 1
        %s173 = smul.addr %s172, 8
        %s174 = scalar_lea.vmem [#allocation2], %s173
        // Predicated region
        $region33: #{tpu_custom_call.1} parent=31 // pred_check
          %p175 = pneg %p42
        $region34: #{tpu_custom_call.1} parent=31 // pred_check_branch
          %177 = sbr.rel (%p175) target = $region36
        $region35: #{tpu_custom_call.1} parent=31 // pred_region
          %178 = dma.done %s171, 128
        $region36: #{tpu_custom_call.1} parent=31 // pred_fallthru
          _
        // Predicated region
        $region37: #{tpu_custom_call.1} parent=31 // pred_check
          %p179 = pneg %p63
        $region38: #{tpu_custom_call.1} parent=31 // pred_check_branch
          %181 = sbr.rel (%p179) target = $region40
        $region39: #{tpu_custom_call.1} parent=31 // pred_region
          %182 = dma.done [#allocation6], 1024
        $region40: #{tpu_custom_call.1} parent=31 // pred_fallthru
          _
        %s183 = sand.u32 %s29, 1
        %s184 = scalar_lea.sflag [#allocation3], %s183
        %s185 = sand.u32 %s29, 1
        %s186 = smul.addr %s185, 8
        %s187 = scalar_lea.vmem [#allocation2], %s186
        %p188 = pneg %p42
        %p189 = pneg %p39
        %p190 = pneg %p63
        %p191 = pneg %p60
        %p192 = pneg %p84
        %p193 = pneg %p81
        %p194 = pneg %p110
        %p195 = pneg %p107
        %s196 = sand.u32 %s97, 1
        %s197 = scalar_lea.sflag [#allocation4], %s196
        %s198 = sand.u32 %s97, 1
        %s199 = smul.addr %s198, 8
        %s200 = scalar_lea.vmem [#allocation7], %s199
        %v201 = vld [vmem:[%s174] sm:$0xff]
        %v202 = vld [vmem:[#allocation5] sm:$0xff]
        %v203 = vld [vmem:[#allocation5 + $0x8] sm:$0xff]
        %v204 = vld [vmem:[#allocation5 + $0x10] sm:$0xff]
        %v205 = vld [vmem:[#allocation5 + $0x18] sm:$0xff]
        %v206 = vld [vmem:[%s2] sm:$0x1]
        %v208 = vlaneseq
        %v209 = vshrl.u32 %v208, 7
        %v210 = vsub.s32 0, %v209
        %v211 = vrot.slane %v206, %v210
        %vm213 = vcmask 261120
        %v215 = vsel %vm213, %v201, 0
        %217 = vmatprep.subr.mxu0 0.0
        %218 = vmatpush1.msra.mxu0 %v202
        %219 = vmatprep.subr.mxu0 0.0
        %220 = vmatpush1.msra.mxu0 %v203
        %221 = vmatprep.subr.mxu0 0.0
        %222 = vmatpush1.msra.mxu0 %v204
        %223 = vmatprep.subr.mxu0 0.0
        %224 = vmatpush1.msra.mxu0 %v205
        %225 = vmatprep.subr.mxu0 0.0
        %226 = vmatpush1.msra.mxu0 0.0
        %227 = vmatprep.subr.mxu0 0.0
        %228 = vmatpush1.msra.mxu0 0.0
        %229 = vmatprep.subr.mxu0 0.0
        %230 = vmatpush1.msra.mxu0 0.0
        %231 = vmatprep.subr.mxu0 0.0
        %232 = vmatpush1.msra.mxu0 0.0
        %233 = vmatprep.subr.mxu0 0.0
        %234 = vmatpush1.msra.mxu0 0.0
        %235 = vmatprep.subr.mxu0 0.0
        %236 = vmatpush1.msra.mxu0 0.0
        %237 = vmatprep.subr.mxu0 0.0
        %238 = vmatpush1.msra.mxu0 0.0
        %239 = vmatprep.subr.mxu0 0.0
        %240 = vmatpush1.msra.mxu0 0.0
        %241 = vmatprep.subr.mxu0 0.0
        %242 = vmatpush1.msra.mxu0 0.0
        %243 = vmatprep.subr.mxu0 0.0
        %244 = vmatpush1.msra.mxu0 0.0
        %245 = vmatprep.subr.mxu0 0.0
        %246 = vmatpush1.msra.mxu0 0.0
        %247 = vmatprep.subr.mxu0 0.0
        %248 = vmatpush1.msra.mxu0 0.0
        %249 = vmatprep.subr.mxu0 0.0
        %250 = vmatpush1.msra.mxu0 0.0
        %251 = vmatprep.subr.mxu0 0.0
        %252 = vmatpush1.msra.mxu0 0.0
        %253 = vmatprep.subr.mxu0 0.0
        %254 = vmatpush1.msra.mxu0 0.0
        %255 = vmatprep.subr.mxu0 0.0
        %256 = vmatpush1.msra.mxu0 0.0
        %257 = vmatprep.subr.mxu0 0.0
        %258 = vmatpush1.msra.mxu0 0.0
        %259 = vmatprep.subr.mxu0 0.0
        %260 = vmatpush1.msra.mxu0 0.0
        %261 = vmatprep.subr.mxu0 0.0
        %262 = vmatpush1.msra.mxu0 0.0
        %263 = vmatprep.subr.mxu0 0.0
        %264 = vmatpush1.msra.mxu0 0.0
        %265 = vmatprep.subr.mxu0 0.0
        %266 = vmatpush1.msra.mxu0 0.0
        %267 = vmatprep.subr.mxu0 0.0
        %268 = vmatpush1.msra.mxu0 0.0
        %269 = vmatprep.subr.mxu0 0.0
        %270 = vmatpush1.msra.mxu0 0.0
        %271 = vmatprep.subr.mxu0 0.0
        %272 = vmatpush1.msra.mxu0 0.0
        %273 = vmatprep.subr.mxu0 0.0
        %274 = vmatpush1.msra.mxu0 0.0
        %275 = vmatprep.subr.mxu0 0.0
        %276 = vmatpush1.msra.mxu0 0.0
        %277 = vmatprep.subr.mxu0 0.0
        %278 = vmatpush1.msra.mxu0 0.0
        %279 = vmatprep.subr.mxu0 0.0
        %280 = vmatpush1.msra.mxu0 0.0
        %281 = vmatprep.mubr.f32.mxu0 0.0
        %282 = vmatmul.mubr.f32.gmra.mrb[0].mxu0 %v215
        %v283 = vpop.f32.mrb[0].mxu0
        %v284 = vadd.f32 %v211, %v283
        %v285 = vpop.f32.mrb[0].mxu0
        %286 = vdwg.mxu0
        %v287 = vmax.f32 %v284, 0.0
        %s288 = scalar_lea.vmem [#allocation5], 32
        %v289 = vld [vmem:[%s288] sm:$0xff]
        %v290 = vld [vmem:[%s288 + $0x8] sm:$0xff]
        %v291 = vld [vmem:[%s288 + $0x10] sm:$0xff]
        %v292 = vld [vmem:[%s288 + $0x18] sm:$0xff]
        %s293 = scalar_lea.vmem %s2, 1
        %v294 = vld [vmem:[%s293] sm:$0x1]
        %v296 = vlaneseq
        %v297 = vshrl.u32 %v296, 7
        %v298 = vsub.s32 0, %v297
        %v299 = vrot.slane %v294, %v298
        %v302 = vsel %vm213, %v287, 0
        %304 = vmatprep.subr.mxu0 0.0
        %305 = vmatpush1.msra.mxu0 %v289
        %306 = vmatprep.subr.mxu0 0.0
        %307 = vmatpush1.msra.mxu0 %v290
        %308 = vmatprep.subr.mxu0 0.0
        %309 = vmatpush1.msra.mxu0 %v291
        %310 = vmatprep.subr.mxu0 0.0
        %311 = vmatpush1.msra.mxu0 %v292
        %312 = vmatprep.subr.mxu0 0.0
        %313 = vmatpush1.msra.mxu0 0.0
        %314 = vmatprep.subr.mxu0 0.0
        %315 = vmatpush1.msra.mxu0 0.0
        %316 = vmatprep.subr.mxu0 0.0
        %317 = vmatpush1.msra.mxu0 0.0
        %318 = vmatprep.subr.mxu0 0.0
        %319 = vmatpush1.msra.mxu0 0.0
        %320 = vmatprep.subr.mxu0 0.0
        %321 = vmatpush1.msra.mxu0 0.0
        %322 = vmatprep.subr.mxu0 0.0
        %323 = vmatpush1.msra.mxu0 0.0
        %324 = vmatprep.subr.mxu0 0.0
        %325 = vmatpush1.msra.mxu0 0.0
        %326 = vmatprep.subr.mxu0 0.0
        %327 = vmatpush1.msra.mxu0 0.0
        %328 = vmatprep.subr.mxu0 0.0
        %329 = vmatpush1.msra.mxu0 0.0
        %330 = vmatprep.subr.mxu0 0.0
        %331 = vmatpush1.msra.mxu0 0.0
        %332 = vmatprep.subr.mxu0 0.0
        %333 = vmatpush1.msra.mxu0 0.0
        %334 = vmatprep.subr.mxu0 0.0
        %335 = vmatpush1.msra.mxu0 0.0
        %336 = vmatprep.subr.mxu0 0.0
        %337 = vmatpush1.msra.mxu0 0.0
        %338 = vmatprep.subr.mxu0 0.0
        %339 = vmatpush1.msra.mxu0 0.0
        %340 = vmatprep.subr.mxu0 0.0
        %341 = vmatpush1.msra.mxu0 0.0
        %342 = vmatprep.subr.mxu0 0.0
        %343 = vmatpush1.msra.mxu0 0.0
        %344 = vmatprep.subr.mxu0 0.0
        %345 = vmatpush1.msra.mxu0 0.0
        %346 = vmatprep.subr.mxu0 0.0
        %347 = vmatpush1.msra.mxu0 0.0
        %348 = vmatprep.subr.mxu0 0.0
        %349 = vmatpush1.msra.mxu0 0.0
        %350 = vmatprep.subr.mxu0 0.0
        %351 = vmatpush1.msra.mxu0 0.0
        %352 = vmatprep.subr.mxu0 0.0
        %353 = vmatpush1.msra.mxu0 0.0
        %354 = vmatprep.subr.mxu0 0.0
        %355 = vmatpush1.msra.mxu0 0.0
        %356 = vmatprep.subr.mxu0 0.0
        %357 = vmatpush1.msra.mxu0 0.0
        %358 = vmatprep.subr.mxu0 0.0
        %359 = vmatpush1.msra.mxu0 0.0
        %360 = vmatprep.subr.mxu0 0.0
        %361 = vmatpush1.msra.mxu0 0.0
        %362 = vmatprep.subr.mxu0 0.0
        %363 = vmatpush1.msra.mxu0 0.0
        %364 = vmatprep.subr.mxu0 0.0
        %365 = vmatpush1.msra.mxu0 0.0
        %366 = vmatprep.subr.mxu0 0.0
        %367 = vmatpush1.msra.mxu0 0.0
        %368 = vmatprep.mubr.f32.mxu0 0.0
        %369 = vmatmul.mubr.f32.gmra.mrb[0].mxu0 %v302
        %v370 = vpop.f32.mrb[0].mxu0
        %v371 = vadd.f32 %v299, %v370
        %v372 = vpop.f32.mrb[0].mxu0
        %373 = vdwg.mxu0
        %v374 = vmax.f32 %v371, 0.0
        %375 = vst.msk [vmem:[%s200] sm:$0xff] %vm213, %v374
        %s376 = sand.u32 %s97, 1
        %s377 = scalar_lea.sflag [#allocation4], %s376
        %s378 = sand.u32 %s97, 1
        %s379 = smul.addr %s378, 8
        %s380 = scalar_lea.vmem [#allocation7], %s379
        // Predicated region
        $region41: #{tpu_custom_call.1} parent=31 // pred_check
          %p381 = pneg %p107
        $region42: #{tpu_custom_call.1} parent=31 // pred_check_branch
          %383 = sbr.rel (%p381) target = $region44
        $region43: #{tpu_custom_call.1} parent=31 // pred_region
          %s385 = ssub.s32 128, 128
          %386 = vsyncadd %s377, %s385
          %s387 = smul.addr %s21, 128
          %s388 = scalar_lea.hbm %s3, %s387
          %s390 = sshll.u32 %s380, 4
          %s391 = int_to_ptr.vmem [resolvable:$true] %s390
          %393 = dma.vmem_to_hbm [thread:$0]  %s391, 128, %s388, %s377
        $region44: #{tpu_custom_call.1} parent=31 // pred_fallthru
          _
      $region32: #{tpu_custom_call.1} parent=5 // pred_fallthru
        _
      %p394 = scmp.le.s32.totalorder 2, %s16
      // Predicated region
      $region45: #{tpu_custom_call.1} parent=5 // pred_check
        %p395 = pneg %p394
      $region46: #{tpu_custom_call.1} parent=5 // pred_check_branch
        %397 = sbr.rel (%p395) target = $region48
      $region47: #{tpu_custom_call.1} parent=5 // pred_region
        %s398 = ssub.s32 %s16, 2
        // Predicated region
        $region49: #{tpu_custom_call.1} parent=47 // pred_check
          %p399 = pneg %p113
        $region50: #{tpu_custom_call.1} parent=47 // pred_check_branch
          %401 = sbr.rel (%p399) target = $region52
        $region51: #{tpu_custom_call.1} parent=47 // pred_region
          %s402 = sand.u32 %s98, 1
          %s403 = scalar_lea.sflag [#allocation4], %s402
          %s404 = sand.u32 %s98, 1
          %s405 = smul.addr %s404, 8
          %s406 = scalar_lea.vmem [#allocation7], %s405
          %407 = dma.done %s403, 128
        $region52: #{tpu_custom_call.1} parent=47 // pred_fallthru
          _
      $region48: #{tpu_custom_call.1} parent=5 // pred_fallthru
        _
    $region6: #{tpu_custom_call.1} parent=1 // loop_footer
      %s20 = sadd.s32 1, %s16
    $region7: #{tpu_custom_call.1} parent=1 // loop_footer_branch
      %15 = sbr.rel target = $region3
    $region8: #{tpu_custom_call.1} parent=1 // loop_exit
      _
    %408 = vsyncpa [#allocation3], 1
    %s409 = scalar_lea.sflag [#allocation3], 1
    %410 = vsyncpa %s409, 1
    %411 = vsyncpa [#allocation6], 1
    %412 = vsyncpa [#allocation4], 1
    %s413 = scalar_lea.sflag [#allocation4], 1
    %414 = vsyncpa %s413, 1

// kernel: tpu_custom_call.1
$region0: #{tpu_custom_call.1}
  #allocation0 [shape = 'u32[]', space=smem, size = 0x4, offset = 0x4, fixed_abs, tag = 'smem constant byte address 0x4 - core index']
  #allocation1 [shape = 'u32[144,128]{1,0:T(1,128)}', space=vmem, size = 0x12000, scoped, tag = 'internal scratch']
  %s0 = inlined_call_operand.hbm [shape: f32[16,32], index: 0, kind: input, shape index: {}]
  %s1 = inlined_call_operand.hbm [shape: f32[2,32,32], index: 1, kind: input, shape index: {}]
  %s2 = inlined_call_operand.vmem [shape: f32[2,1,32], index: 2, kind: input, shape index: {}]
  %s3 = inlined_call_operand.hbm [shape: f32[16,32], index: 3, kind: output, shape index: {}]
  %s4 = sld [smem:[#allocation0]]
  $region53: #{tpu_custom_call.1} parent=0
    _
  %s6 = ssub.s32 1, %s4
  %s7 = scalar_select 0, %s6, %s4
  $region1: #{tpu_custom_call.1} parent=0
    #allocation2 [shape = 'u8[8192]{0}', space=vmem, size = 0x2000, scoped, tag = 'input window, operand 0']
    #allocation3 [shape = 's32[2]{0}', space=sflag, size = 0x8, scoped, tag = 'scoped memory for tpu_custom_call.1']
    #allocation4 [shape = 's32[2]{0}', space=sflag, size = 0x8, scoped, tag = 'scoped memory for tpu_custom_call.1']
    #allocation5 [shape = 'u8[32768]{0}', space=vmem, size = 0x8000, scoped, tag = 'input window, operand 1, single buffered']
    #allocation6 [shape = 's32[1]{0}', space=sflag, size = 0x4, scoped, tag = 'scoped memory for tpu_custom_call.1']
    #allocation7 [shape = 'u8[8192]{0}', space=vmem, size = 0x2000, scoped, tag = 'output window, operand 0']
    %8 = vsyncpa [#allocation3], 0
    %s9 = scalar_lea.sflag [#allocation3], 1
    %10 = vsyncpa %s9, 0
    %11 = vsyncpa [#allocation6], 0
    %12 = vsyncpa [#allocation4], 0
    %s13 = scalar_lea.sflag [#allocation4], 1
    %14 = vsyncpa %s13, 0
    loop: start=0, step=1, limit=4
    $region2: #{tpu_custom_call.1} parent=1 // loop_pre_header
      _
    $region3: #{tpu_custom_call.1} parent=1 // loop_header
      %s16 = sphi 0, %s20
      %p17 = scmp.ge.s32.totalorder %s16, 4
      %s26 = sphi 0, %s28
      %s29 = sphi 0, %s26
      %s30 = sphi 0, %s29
      %s46 = sphi 0, %s30
      %s50 = sphi 0, %s50
      %s52 = sphi 0, %s50
      %s53 = sphi 0, %s52
      %s67 = sphi 0, %s53
      %s71 = sphi 0, %s71
      %s73 = sphi 0, %s71
      %s74 = sphi 0, %s73
      %s88 = sphi 0, %s74
      %s94 = sphi 0, %s96
      %s97 = sphi 0, %s94
      %s98 = sphi 0, %s97
      %s114 = sphi 0, %s98
    $region4: #{tpu_custom_call.1} parent=1 // loop_header_branch
      %19 = sbr.rel (%p17) target = $region8
    $region5: #{tpu_custom_call.1} parent=1 // loop_body
      %s21 = ssub.s32 %s16, 1
      %s22 = ssub.s32 %s16, 2
      %s23 = sadd.s32 %s16, 1
      %s24 = ssub.s32 %s16, %s23
      %p25 = scmp.eq.s32.totalorder %s24, 0
      %s27 = sadd.s32 %s26, 1
      %s28 = scalar_select %p25, %s26, %s27
      %p31 = pneg %p25
      %p32 = scmp.eq.s32.totalorder %s16, 1
      %p33 = por %p31, %p32
      %p34 = scmp.ne.s32.totalorder %s26, %s29
      %p35 = scmp.eq.s32.totalorder %s16, 0
      %p36 = por %p34, %p35
      %p37 = scmp.ne.s32.totalorder %s26, %s29
      %p38 = scmp.eq.s32.totalorder %s21, 1
      %p39 = por %p37, %p38
      %p40 = scmp.ne.s32.totalorder %s29, %s30
      %p41 = scmp.eq.s32.totalorder %s21, 0
      %p42 = por %p40, %p41
      %p43 = scmp.ne.s32.totalorder %s29, %s30
      %p44 = scmp.eq.s32.totalorder %s22, 1
      %p45 = por %p43, %p44
      %p47 = scmp.ne.s32.totalorder %s30, %s46
      %p48 = scmp.eq.s32.totalorder %s22, 0
      %p49 = por %p47, %p48
      %s51 = sadd.s32 %s50, 1
      %p54 = scmp.eq.s32.totalorder %s16, 1
      %p55 = scmp.ne.s32.totalorder %s50, %s52
      %p56 = scmp.eq.s32.totalorder %s16, 0
      %p57 = por %p55, %p56
      %p58 = scmp.ne.s32.totalorder %s50, %s52
      %p59 = scmp.eq.s32.totalorder %s21, 1
      %p60 = por %p58, %p59
      %p61 = scmp.ne.s32.totalorder %s52, %s53
      %p62 = scmp.eq.s32.totalorder %s21, 0
      %p63 = por %p61, %p62
      %p64 = scmp.ne.s32.totalorder %s52, %s53
      %p65 = scmp.eq.s32.totalorder %s22, 1
      %p66 = por %p64, %p65
      %p68 = scmp.ne.s32.totalorder %s53, %s67
      %p69 = scmp.eq.s32.totalorder %s22, 0
      %p70 = por %p68, %p69
      %s72 = sadd.s32 %s71, 1
      %p75 = scmp.eq.s32.totalorder %s16, 1
      %p76 = scmp.ne.s32.totalorder %s71, %s73
      %p77 = scmp.eq.s32.totalorder %s16, 0
      %p78 = por %p76, %p77
      %p79 = scmp.ne.s32.totalorder %s71, %s73
      %p80 = scmp.eq.s32.totalorder %s21, 1
      %p81 = por %p79, %p80
      %p82 = scmp.ne.s32.totalorder %s73, %s74
      %p83 = scmp.eq.s32.totalorder %s21, 0
      %p84 = por %p82, %p83
      %p85 = scmp.ne.s32.totalorder %s73, %s74
      %p86 = scmp.eq.s32.totalorder %s22, 1
      %p87 = por %p85, %p86
      %p89 = scmp.ne.s32.totalorder %s74, %s88
      %p90 = scmp.eq.s32.totalorder %s22, 0
      %p91 = por %p89, %p90
      %s92 = ssub.s32 %s16, %s23
      %p93 = scmp.eq.s32.totalorder %s92, 0
      %s95 = sadd.s32 %s94, 1
      %s96 = scalar_select %p93, %s94, %s95
      %p99 = pneg %p93
      %p100 = scmp.eq.s32.totalorder %s16, 1
      %p101 = por %p99, %p100
      %p102 = scmp.ne.s32.totalorder %s94, %s97
      %p103 = scmp.eq.s32.totalorder %s16, 0
      %p104 = por %p102, %p103
      %p105 = scmp.ne.s32.totalorder %s94, %s97
      %p106 = scmp.eq.s32.totalorder %s21, 1
      %p107 = por %p105, %p106
      %p108 = scmp.ne.s32.totalorder %s97, %s98
      %p109 = scmp.eq.s32.totalorder %s21, 0
      %p110 = por %p108, %p109
      %p111 = scmp.ne.s32.totalorder %s97, %s98
      %p112 = scmp.eq.s32.totalorder %s22, 1
      %p113 = por %p111, %p112
      %p115 = scmp.ne.s32.totalorder %s98, %s114
      %p116 = scmp.eq.s32.totalorder %s22, 0
      %p117 = por %p115, %p116
      %p118 = scmp.le.s32.totalorder 1, %s16
      %p119 = scmp.lt.s32.totalorder %s16, 3
      %p120 = pnand %p118, %p119
      %p121 = pneg %p120
      // Predicated region
      $region9: #{tpu_custom_call.1} parent=5 // pred_check
        _
      $region10: #{tpu_custom_call.1} parent=5 // pred_check_branch
        %123 = sbr.rel (%p120) target = $region12
      $region11: #{tpu_custom_call.1} parent=5 // pred_region
        %s124 = ssub.s32 %s16, 1
        // Predicated region
        $region13: #{tpu_custom_call.1} parent=11 // pred_check
          %p125 = pneg %p63
        $region14: #{tpu_custom_call.1} parent=11 // pred_check_branch
          %127 = sbr.rel (%p125) target = $region16
        $region15: #{tpu_custom_call.1} parent=11 // pred_region
          %s129 = ssub.s32 1024, 1024
          %130 = vsyncadd [#allocation6], %s129
          %s131 = sshll.u32 [#allocation5], 4
          %s132 = int_to_ptr.vmem [resolvable:$true] %s131
          %137 = dma.hbm_to_vmem [thread:$0]  %s1, 1024, %s132, [#allocation6], 128, 128, 8
        $region16: #{tpu_custom_call.1} parent=11 // pred_fallthru
          _
        // Predicated region
        $region17: #{tpu_custom_call.1} parent=11 // pred_check
          %p138 = pneg %p84
        $region18: #{tpu_custom_call.1} parent=11 // pred_check_branch
          %140 = sbr.rel (%p138) target = $region20
        $region19: #{tpu_custom_call.1} parent=11 // pred_region
          _
        $region20: #{tpu_custom_call.1} parent=11 // pred_fallthru
          _
      $region12: #{tpu_custom_call.1} parent=5 // pred_fallthru
        _
      %p141 = scmp.lt.s32.totalorder %s16, 2
      // Predicated region
      $region21: #{tpu_custom_call.1} parent=5 // pred_check
        %p142 = pneg %p141
      $region22: #{tpu_custom_call.1} parent=5 // pred_check_branch
        %144 = sbr.rel (%p142) target = $region24
      $region23: #{tpu_custom_call.1} parent=5 // pred_region
        // Predicated region
        $region25: #{tpu_custom_call.1} parent=23 // pred_check
          %p145 = pneg %p36
        $region26: #{tpu_custom_call.1} parent=23 // pred_check_branch
          %147 = sbr.rel (%p145) target = $region28
        $region27: #{tpu_custom_call.1} parent=23 // pred_region
          %s148 = sand.u32 %s26, 1
          %s149 = scalar_lea.sflag [#allocation3], %s148
          %s150 = sand.u32 %s26, 1
          %s151 = smul.addr %s150, 8
          %s152 = scalar_lea.vmem [#allocation2], %s151
          %s154 = ssub.s32 128, 128
          %155 = vsyncadd %s149, %s154
          %s156 = smul.addr %s16, 128
          %s157 = scalar_lea.hbm %s0, %s156
          %s159 = sshll.u32 %s152, 4
          %s160 = int_to_ptr.vmem [resolvable:$true] %s159
          %162 = dma.hbm_to_vmem [thread:$0]  %s157, 128, %s160, %s149
        $region28: #{tpu_custom_call.1} parent=23 // pred_fallthru
          _
      $region24: #{tpu_custom_call.1} parent=5 // pred_fallthru
        _
      %p163 = scmp.le.s32.totalorder 1, %s16
      %p164 = scmp.lt.s32.totalorder %s16, 3
      %p165 = pnand %p163, %p164
      %p166 = pneg %p165
      // Predicated region
      $region29: #{tpu_custom_call.1} parent=5 // pred_check
        _
      $region30: #{tpu_custom_call.1} parent=5 // pred_check_branch
        %168 = sbr.rel (%p165) target = $region32
      $region31: #{tpu_custom_call.1} parent=5 // pred_region
        %s169 = ssub.s32 %s16, 1
        %s170 = sand.u32 %s29, 1
        %s171 = scalar_lea.sflag [#allocation3], %s170
        %s172 = sand.u32 %s29, 1
        %s173 = smul.addr %s172, 8
        %s174 = scalar_lea.vmem [#allocation2], %s173
        // Predicated region
        $region33: #{tpu_custom_call.1} parent=31 // pred_check
          %p175 = pneg %p42
        $region34: #{tpu_custom_call.1} parent=31 // pred_check_branch
          %177 = sbr.rel (%p175) target = $region36
        $region35: #{tpu_custom_call.1} parent=31 // pred_region
          %178 = dma.done %s171, 128
        $region36: #{tpu_custom_call.1} parent=31 // pred_fallthru
          _
        // Predicated region
        $region37: #{tpu_custom_call.1} parent=31 // pred_check
          %p179 = pneg %p63
        $region38: #{tpu_custom_call.1} parent=31 // pred_check_branch
          %181 = sbr.rel (%p179) target = $region40
        $region39: #{tpu_custom_call.1} parent=31 // pred_region
          %182 = dma.done [#allocation6], 1024
        $region40: #{tpu_custom_call.1} parent=31 // pred_fallthru
          _
        %s183 = sand.u32 %s29, 1
        %s184 = scalar_lea.sflag [#allocation3], %s183
        %s185 = sand.u32 %s29, 1
        %s186 = smul.addr %s185, 8
        %s187 = scalar_lea.vmem [#allocation2], %s186
        %p188 = pneg %p42
        %p189 = pneg %p39
        %p190 = pneg %p63
        %p191 = pneg %p60
        %p192 = pneg %p84
        %p193 = pneg %p81
        %p194 = pneg %p110
        %p195 = pneg %p107
        %s196 = sand.u32 %s97, 1
        %s197 = scalar_lea.sflag [#allocation4], %s196
        %s198 = sand.u32 %s97, 1
        %s199 = smul.addr %s198, 8
        %s200 = scalar_lea.vmem [#allocation7], %s199
        %v201 = vld [vmem:[%s174] sm:$0xff]
        %v202 = vld [vmem:[#allocation5] sm:$0xff]
        %v203 = vld [vmem:[#allocation5 + $0x8] sm:$0xff]
        %v204 = vld [vmem:[#allocation5 + $0x10] sm:$0xff]
        %v205 = vld [vmem:[#allocation5 + $0x18] sm:$0xff]
        %v206 = vld [vmem:[%s2] sm:$0x1]
        %v208 = vlaneseq
        %v209 = vshrl.u32 %v208, 7
        %v210 = vsub.s32 0, %v209
        %v211 = vrot.slane %v206, %v210
        %vm213 = vcmask 261120
        %v215 = vsel %vm213, %v201, 0
        %217 = vmatprep.subr.mxu0 0.0
        %218 = vmatpush1.msra.mxu0 %v202
        %219 = vmatprep.subr.mxu0 0.0
        %220 = vmatpush1.msra.mxu0 %v203
        %221 = vmatprep.subr.mxu0 0.0
        %222 = vmatpush1.msra.mxu0 %v204
        %223 = vmatprep.subr.mxu0 0.0
        %224 = vmatpush1.msra.mxu0 %v205
        %225 = vmatprep.subr.mxu0 0.0
        %226 = vmatpush1.msra.mxu0 0.0
        %227 = vmatprep.subr.mxu0 0.0
        %228 = vmatpush1.msra.mxu0 0.0
        %229 = vmatprep.subr.mxu0 0.0
        %230 = vmatpush1.msra.mxu0 0.0
        %231 = vmatprep.subr.mxu0 0.0
        %232 = vmatpush1.msra.mxu0 0.0
        %233 = vmatprep.subr.mxu0 0.0
        %234 = vmatpush1.msra.mxu0 0.0
        %235 = vmatprep.subr.mxu0 0.0
        %236 = vmatpush1.msra.mxu0 0.0
        %237 = vmatprep.subr.mxu0 0.0
        %238 = vmatpush1.msra.mxu0 0.0
        %239 = vmatprep.subr.mxu0 0.0
        %240 = vmatpush1.msra.mxu0 0.0
        %241 = vmatprep.subr.mxu0 0.0
        %242 = vmatpush1.msra.mxu0 0.0
        %243 = vmatprep.subr.mxu0 0.0
        %244 = vmatpush1.msra.mxu0 0.0
        %245 = vmatprep.subr.mxu0 0.0
        %246 = vmatpush1.msra.mxu0 0.0
        %247 = vmatprep.subr.mxu0 0.0
        %248 = vmatpush1.msra.mxu0 0.0
        %249 = vmatprep.subr.mxu0 0.0
        %250 = vmatpush1.msra.mxu0 0.0
        %251 = vmatprep.subr.mxu0 0.0
        %252 = vmatpush1.msra.mxu0 0.0
        %253 = vmatprep.subr.mxu0 0.0
        %254 = vmatpush1.msra.mxu0 0.0
        %255 = vmatprep.subr.mxu0 0.0
        %256 = vmatpush1.msra.mxu0 0.0
        %257 = vmatprep.subr.mxu0 0.0
        %258 = vmatpush1.msra.mxu0 0.0
        %259 = vmatprep.subr.mxu0 0.0
        %260 = vmatpush1.msra.mxu0 0.0
        %261 = vmatprep.subr.mxu0 0.0
        %262 = vmatpush1.msra.mxu0 0.0
        %263 = vmatprep.subr.mxu0 0.0
        %264 = vmatpush1.msra.mxu0 0.0
        %265 = vmatprep.subr.mxu0 0.0
        %266 = vmatpush1.msra.mxu0 0.0
        %267 = vmatprep.subr.mxu0 0.0
        %268 = vmatpush1.msra.mxu0 0.0
        %269 = vmatprep.subr.mxu0 0.0
        %270 = vmatpush1.msra.mxu0 0.0
        %271 = vmatprep.subr.mxu0 0.0
        %272 = vmatpush1.msra.mxu0 0.0
        %273 = vmatprep.subr.mxu0 0.0
        %274 = vmatpush1.msra.mxu0 0.0
        %275 = vmatprep.subr.mxu0 0.0
        %276 = vmatpush1.msra.mxu0 0.0
        %277 = vmatprep.subr.mxu0 0.0
        %278 = vmatpush1.msra.mxu0 0.0
        %279 = vmatprep.subr.mxu0 0.0
        %280 = vmatpush1.msra.mxu0 0.0
        %281 = vmatprep.mubr.f32.mxu0 0.0
        %282 = vmatmul.mubr.f32.gmra.mrb[0].mxu0 %v215
        %v283 = vpop.f32.mrb[0].mxu0
        %v284 = vadd.f32 %v211, %v283
        %v285 = vpop.f32.mrb[0].mxu0
        %286 = vdwg.mxu0
        %v287 = vmax.f32 %v284, 0.0
        %s288 = scalar_lea.vmem [#allocation5], 32
        %v289 = vld [vmem:[%s288] sm:$0xff]
        %v290 = vld [vmem:[%s288 + $0x8] sm:$0xff]
        %v291 = vld [vmem:[%s288 + $0x10] sm:$0xff]
        %v292 = vld [vmem:[%s288 + $0x18] sm:$0xff]
        %s293 = scalar_lea.vmem %s2, 1
        %v294 = vld [vmem:[%s293] sm:$0x1]
        %v296 = vlaneseq
        %v297 = vshrl.u32 %v296, 7
        %v298 = vsub.s32 0, %v297
        %v299 = vrot.slane %v294, %v298
        %v302 = vsel %vm213, %v287, 0
        %304 = vmatprep.subr.mxu0 0.0
        %305 = vmatpush1.msra.mxu0 %v289
        %306 = vmatprep.subr.mxu0 0.0
        %307 = vmatpush1.msra.mxu0 %v290
        %308 = vmatprep.subr.mxu0 0.0
        %309 = vmatpush1.msra.mxu0 %v291
        %310 = vmatprep.subr.mxu0 0.0
        %311 = vmatpush1.msra.mxu0 %v292
        %312 = vmatprep.subr.mxu0 0.0
        %313 = vmatpush1.msra.mxu0 0.0
        %314 = vmatprep.subr.mxu0 0.0
        %315 = vmatpush1.msra.mxu0 0.0
        %316 = vmatprep.subr.mxu0 0.0
        %317 = vmatpush1.msra.mxu0 0.0
        %318 = vmatprep.subr.mxu0 0.0
        %319 = vmatpush1.msra.mxu0 0.0
        %320 = vmatprep.subr.mxu0 0.0
        %321 = vmatpush1.msra.mxu0 0.0
        %322 = vmatprep.subr.mxu0 0.0
        %323 = vmatpush1.msra.mxu0 0.0
        %324 = vmatprep.subr.mxu0 0.0
        %325 = vmatpush1.msra.mxu0 0.0
        %326 = vmatprep.subr.mxu0 0.0
        %327 = vmatpush1.msra.mxu0 0.0
        %328 = vmatprep.subr.mxu0 0.0
        %329 = vmatpush1.msra.mxu0 0.0
        %330 = vmatprep.subr.mxu0 0.0
        %331 = vmatpush1.msra.mxu0 0.0
        %332 = vmatprep.subr.mxu0 0.0
        %333 = vmatpush1.msra.mxu0 0.0
        %334 = vmatprep.subr.mxu0 0.0
        %335 = vmatpush1.msra.mxu0 0.0
        %336 = vmatprep.subr.mxu0 0.0
        %337 = vmatpush1.msra.mxu0 0.0
        %338 = vmatprep.subr.mxu0 0.0
        %339 = vmatpush1.msra.mxu0 0.0
        %340 = vmatprep.subr.mxu0 0.0
        %341 = vmatpush1.msra.mxu0 0.0
        %342 = vmatprep.subr.mxu0 0.0
        %343 = vmatpush1.msra.mxu0 0.0
        %344 = vmatprep.subr.mxu0 0.0
        %345 = vmatpush1.msra.mxu0 0.0
        %346 = vmatprep.subr.mxu0 0.0
        %347 = vmatpush1.msra.mxu0 0.0
        %348 = vmatprep.subr.mxu0 0.0
        %349 = vmatpush1.msra.mxu0 0.0
        %350 = vmatprep.subr.mxu0 0.0
        %351 = vmatpush1.msra.mxu0 0.0
        %352 = vmatprep.subr.mxu0 0.0
        %353 = vmatpush1.msra.mxu0 0.0
        %354 = vmatprep.subr.mxu0 0.0
        %355 = vmatpush1.msra.mxu0 0.0
        %356 = vmatprep.subr.mxu0 0.0
        %357 = vmatpush1.msra.mxu0 0.0
        %358 = vmatprep.subr.mxu0 0.0
        %359 = vmatpush1.msra.mxu0 0.0
        %360 = vmatprep.subr.mxu0 0.0
        %361 = vmatpush1.msra.mxu0 0.0
        %362 = vmatprep.subr.mxu0 0.0
        %363 = vmatpush1.msra.mxu0 0.0
        %364 = vmatprep.subr.mxu0 0.0
        %365 = vmatpush1.msra.mxu0 0.0
        %366 = vmatprep.subr.mxu0 0.0
        %367 = vmatpush1.msra.mxu0 0.0
        %368 = vmatprep.mubr.f32.mxu0 0.0
        %369 = vmatmul.mubr.f32.gmra.mrb[0].mxu0 %v302
        %v370 = vpop.f32.mrb[0].mxu0
        %v371 = vadd.f32 %v299, %v370
        %v372 = vpop.f32.mrb[0].mxu0
        %373 = vdwg.mxu0
        %v374 = vmax.f32 %v371, 0.0
        %375 = vst.msk [vmem:[%s200] sm:$0xff] %vm213, %v374
        %s376 = sand.u32 %s97, 1
        %s377 = scalar_lea.sflag [#allocation4], %s376
        %s378 = sand.u32 %s97, 1
        %s379 = smul.addr %s378, 8
        %s380 = scalar_lea.vmem [#allocation7], %s379
        // Predicated region
        $region41: #{tpu_custom_call.1} parent=31 // pred_check
          %p381 = pneg %p107
        $region42: #{tpu_custom_call.1} parent=31 // pred_check_branch
          %383 = sbr.rel (%p381) target = $region44
        $region43: #{tpu_custom_call.1} parent=31 // pred_region
          %s385 = ssub.s32 128, 128
          %386 = vsyncadd %s377, %s385
          %s387 = smul.addr %s21, 128
          %s388 = scalar_lea.hbm %s3, %s387
          %s390 = sshll.u32 %s380, 4
          %s391 = int_to_ptr.vmem [resolvable:$true] %s390
          %393 = dma.vmem_to_hbm [thread:$0]  %s391, 128, %s388, %s377
        $region44: #{tpu_custom_call.1} parent=31 // pred_fallthru
          _
      $region32: #{tpu_custom_call.1} parent=5 // pred_fallthru
        _
      %p394 = scmp.le.s32.totalorder 2, %s16
      // Predicated region
      $region45: #{tpu_custom_call.1} parent=5 // pred_check
        %p395 = pneg %p394
      $region46: #{tpu_custom_call.1} parent=5 // pred_check_branch
        %397 = sbr.rel (%p395) target = $region48
      $region47: #{tpu_custom_call.1} parent=5 // pred_region
        %s398 = ssub.s32 %s16, 2
        // Predicated region
        $region49: #{tpu_custom_call.1} parent=47 // pred_check
          %p399 = pneg %p113
        $region50: #{tpu_custom_call.1} parent=47 // pred_check_branch
          %401 = sbr.rel (%p399) target = $region52
        $region51: #{tpu_custom_call.1} parent=47 // pred_region
          %s402 = sand.u32 %s98, 1
          %s403 = scalar_lea.sflag [#allocation4], %s402
          %s404 = sand.u32 %s98, 1
          %s405 = smul.addr %s404, 8
          %s406 = scalar_lea.vmem [#allocation7], %s405
          %407 = dma.done %s403, 128
        $region52: #{tpu_custom_call.1} parent=47 // pred_fallthru
          _
      $region48: #{tpu_custom_call.1} parent=5 // pred_fallthru
        _
    $region6: #{tpu_custom_call.1} parent=1 // loop_footer
      %s20 = sadd.s32 1, %s16
    $region7: #{tpu_custom_call.1} parent=1 // loop_footer_branch
      %15 = sbr.rel target = $region3
    $region8: #{tpu_custom_call.1} parent=1 // loop_exit
      _
    %408 = vsyncpa [#allocation3], 1
    %s409 = scalar_lea.sflag [#allocation3], 1
    %410 = vsyncpa %s409, 1
    %411 = vsyncpa [#allocation6], 1
    %412 = vsyncpa [#allocation4], 1
    %s413 = scalar_lea.sflag [#allocation4], 1
    %414 = vsyncpa %s413, 1

</llo_original>
